<compile_context>
chip_gen: v6e
topology: v6e:2x2x1
jax: 0.10.0
libtpu: 0.0.40
codegen_flags: <defaults>
</compile_context>

<pallas_src>
import functools

import jax
import jax.numpy as jnp
import numpy as np
from jax.experimental import pallas as pl
from jax.experimental.pallas import tpu as pltpu

POSITIVE_WEIGHT = 1.0
DERIVATIVE_WEIGHT = 1.0
BOUNDEDNESS_WEIGHT = 0.1

# Rows of the packed partial-sum output block (row 7 is dead padding to keep 8-sublane tiles).
_ROW_NEAR_SUM, _ROW_NEAR_CNT = 0, 1
_ROW_FAR_SUM, _ROW_FAR_CNT = 2, 3
_ROW_D_SUM, _ROW_D_CNT = 4, 5
_ROW_VSQ = 6
_N_USED_ROWS = 7
_N_ROWS = 8


def _lyapunov_partial_kernel(
    xu_ref, o_ref, wcomb_ref, b1c_ref, w2c_ref, b2_ref,   # inputs
    out_ref,                                              # packed partial sums (8, TB)
    *, s_dim, h_dim, tb, tiles_per_shard, batch,
):
    shard = pl.program_id(0)   # parallel axis (dual-TC parts: one per TensorCore)
    t = pl.program_id(1)       # arbitrary (reduction) axis over batch tiles

    # Output block revisited across the arbitrary axis -> acts as an accumulator.
    @pl.when(t == 0)
    def _init():
        out_ref[...] = jnp.zeros_like(out_ref)

    xu = xu_ref[...]                      # (S+U, TB) f32, batch on lanes
    x = xu[:s_dim, :]                     # (S,  TB)
    o = o_ref[...]                        # (S,  1)
    wcomb = wcomb_ref[...]                # (2H, S+U) == [[W1^T | 0]; [W1^T A | W1^T B]]
    b1c = b1c_ref[...]                    # (H,  1)
    w2c = w2c_ref[...]                    # (H,  1)
    b2 = b2_ref[...]                      # (1,  1)

    # --- single fused matmul: hidden pre-activation + Lie pre-activation ----------------
    hg = jnp.dot(wcomb, xu, preferred_element_type=jnp.float32)               # (2H, TB)
    h = jnp.tanh(hg[:h_dim, :] + b1c)                                         # (H, TB)
    g = hg[h_dim:, :]                                                         # (H, TB)  == W1^T (Ax+Bu)

    # V(x) = w2 . h + b2   ;   lie = grad V . dyn = sum_H (1-h^2) * w2 * g
    v = jnp.sum(h * w2c, axis=0, keepdims=True) + b2                          # (1, TB)
    lie = jnp.sum((1.0 - h * h) * w2c * g, axis=0, keepdims=True)             # (1, TB)

    # --- distance from origin ------------------------------------------------------------
    diff = x - o
    dist = jnp.sqrt(jnp.sum(diff * diff, axis=0, keepdims=True))              # (1, TB)

    # valid-sample lane mask (drops zero-padding of the last / unused tiles)
    base = (shard * tiles_per_shard + t) * tb
    lane = jax.lax.broadcasted_iota(jnp.int32, (1, tb), 1)
    smask = ((base + lane) < batch).astype(jnp.float32)                       # (1, TB)

    near = (dist < 0.01).astype(jnp.float32) * smask
    far = smask - near
    valid = (dist > 1e-4).astype(jnp.float32) * smask

    # --- packed partial sums (lane-wise; final lane reduction happens in the wrapper) ----
    partial = jnp.concatenate([
        jnp.maximum(0.1 - v, 0.0) * near,              # 0: near_sum
        near,                                          # 1: near_cnt
        jnp.maximum(0.1 * dist - v, 0.0) * far,        # 2: far_sum
        far,                                           # 3: far_cnt
        jnp.maximum(lie + 0.1 * dist, 0.0) * valid,    # 4: d_sum
        valid,                                         # 5: d_cnt
        (v * v) * smask,                               # 6: sum(v^2)
        jnp.zeros((1, tb), jnp.float32),               # 7: dead pad row
    ], axis=0)                                         # (8, TB)
    out_ref[...] += partial


def _num_tensorcores():
    """2 shards only on dual-TensorCore parts (v4 megacore / v7x); 1 on v5e / v6e."""
    try:
        kind = jax.devices()[0].device_kind.lower()
    except Exception:
        return 1
    if "v4" in kind or "v7" in kind:
        return 2
    return 1


def _choose_tile(batch, num_shards):
    """Per-shard lane-tile: whole padded shard up to 8192 lanes (amortize grid-step cost)."""
    per_shard = -(-batch // num_shards)
    tb = ((per_shard + 127) // 128) * 128
    return max(128, min(tb, 8192))


def lyapunov_loss(states, controls, origin, params):
    """Wrapper around the Pallas kernel. Returns dict of scalar losses."""
    w1, b1, w2, b2, a_mat, b_mat = (
        params["w1"], params["b1"], params["w2"], params["b2"],
        params["A"], params["B"],
    )
    batch, s_dim = states.shape
    u_dim = controls.shape[1]
    h_dim = w1.shape[1]

    num_shards = _num_tensorcores()
    if batch < 256:
        num_shards = 1
    tb = _choose_tile(batch, num_shards)
    tiles_per_shard = -(-batch // (num_shards * tb))
    b_pad = num_shards * tiles_per_shard * tb

    # Lane-dense, fused-input layout (plain-JAX glue).
    xu = jnp.concatenate([states.T, controls.T], axis=0).astype(jnp.float32)  # (S+U, B)
    xu = jnp.pad(xu, ((0, 0), (0, b_pad - batch)))
    o_col = origin.reshape(-1, 1).astype(jnp.float32)                          # (S, 1)
    w1t = w1.T.astype(jnp.float32)                                             # (H, S)
    ab = jnp.concatenate([a_mat, b_mat], axis=1).astype(jnp.float32)           # (S, S+U)
    w_comb = jnp.concatenate(                                                  # (2H, S+U)
        [jnp.concatenate([w1t, jnp.zeros((h_dim, u_dim), jnp.float32)], axis=1),
         w1t @ ab],
        axis=0)
    b1c = b1.reshape(-1, 1).astype(jnp.float32)                                # (H, 1)
    w2c = w2.reshape(-1, 1).astype(jnp.float32)                                # (H, 1)
    b2m = b2.reshape(1, 1).astype(jnp.float32)                                 # (1, 1)

    kernel = functools.partial(
        _lyapunov_partial_kernel,
        s_dim=s_dim, h_dim=h_dim, tb=tb,
        tiles_per_shard=tiles_per_shard, batch=batch,
    )

    def param_spec(shape):
        return pl.BlockSpec(shape, lambda s, t: (0, 0))

    out = pl.pallas_call(
        kernel,
        out_shape=jax.ShapeDtypeStruct((num_shards * _N_ROWS, tb), jnp.float32),
        grid=(num_shards, tiles_per_shard),
        in_specs=[
            pl.BlockSpec((s_dim + u_dim, tb),
                         lambda s, t: (0, s * tiles_per_shard + t)),
            param_spec((s_dim, 1)),
            param_spec((2 * h_dim, s_dim + u_dim)),
            param_spec((h_dim, 1)),
            param_spec((h_dim, 1)),
            param_spec((1, 1)),
        ],
        out_specs=pl.BlockSpec((_N_ROWS, tb), lambda s, t: (s, 0)),
        compiler_params=pltpu.CompilerParams(
            dimension_semantics=("parallel", "arbitrary"),
            vmem_limit_bytes=32 * 1024 * 1024,   # safe ceiling even on v7x's 64 MiB VMEM
        ),
    )(xu, o_col, w_comb, b1c, w2c, b2m)

    # --- tiny plain-JAX finalization (origin scalar, masked means, weighted total) -------
    out = out.reshape(num_shards, _N_ROWS, tb)
    sums = jnp.sum(out[:, :_N_USED_ROWS, :], axis=(0, 2))       # (7,)
    near_sum, near_cnt = sums[_ROW_NEAR_SUM], sums[_ROW_NEAR_CNT]
    far_sum, far_cnt = sums[_ROW_FAR_SUM], sums[_ROW_FAR_CNT]
    d_sum, d_cnt = sums[_ROW_D_SUM], sums[_ROW_D_CNT]
    vsq_sum = sums[_ROW_VSQ]

    # V(origin): scalar, evaluated once — plain JAX is the right place for it.
    origin_f32 = origin.astype(jnp.float32).reshape(1, s_dim)
    vo = jnp.tanh(origin_f32 @ w1.astype(jnp.float32) + b1.astype(jnp.float32).reshape(1, -1))
    vo = vo @ w2.astype(jnp.float32).reshape(-1, 1) + b2.astype(jnp.float32).reshape(1, 1)
    origin_loss = jnp.abs(vo).mean()

    near_loss = jnp.where(near_cnt > 0, near_sum / jnp.maximum(near_cnt, 1.0), 0.0)
    far_loss = jnp.where(far_cnt > 0, far_sum / jnp.maximum(far_cnt, 1.0), 0.0)
    positive_loss = origin_loss + near_loss + far_loss
    derivative_loss = jnp.where(d_cnt > 0, d_sum / jnp.maximum(d_cnt, 1.0), 0.0)
    boundedness_loss = vsq_sum / batch
    total = (POSITIVE_WEIGHT * positive_loss
             + DERIVATIVE_WEIGHT * derivative_loss
             + BOUNDEDNESS_WEIGHT * boundedness_loss)

    return {
        "total_loss": total,
        "positive_loss": positive_loss,
        "derivative_loss": derivative_loss,
        "boundedness_loss": boundedness_loss,
        "origin_loss": origin_loss,
        "near_origin_loss": near_loss,
        "far_from_origin_loss": far_loss,
    }


def _reference(states, controls, origin, params):
    """Pure-JAX reference of the intended forward semantics (for validation)."""
    w1, b1, w2, b2, a_mat, b_mat = (
        params["w1"], params["b1"], params["w2"], params["b2"],
        params["A"], params["B"],
    )

    def net(x):
        return jnp.tanh(x @ w1 + b1) @ w2 + b2                 # (B, 1)

    v = net(states)
    vo = net(origin)
    dist = jnp.linalg.norm(states - origin, axis=1, keepdims=True)
    near = dist < 0.01
    far = ~near

    def masked_mean(vals, mask):
        cnt = jnp.sum(mask.astype(jnp.float32))
        s = jnp.sum(vals * mask.astype(jnp.float32))
        return jnp.where(cnt > 0, s / jnp.maximum(cnt, 1.0), 0.0)

    origin_loss = jnp.abs(vo).mean()
    near_loss = masked_mean(jax.nn.relu(0.1 - v), near)
    far_loss = masked_mean(jax.nn.relu(0.1 * dist - v), far)
    positive_loss = origin_loss + near_loss + far_loss

    grad = jax.vmap(jax.grad(lambda xx: net(xx[None, :])[0, 0]))(states)    # (B, S)
    dyn = states @ a_mat.T + controls @ b_mat.T
    lie = jnp.sum(grad * dyn, axis=1, keepdims=True)
    valid = dist > 1e-4
    derivative_loss = masked_mean(jax.nn.relu(lie + 0.1 * dist), valid)

    boundedness_loss = jnp.mean(v ** 2)
    total = (POSITIVE_WEIGHT * positive_loss + DERIVATIVE_WEIGHT * derivative_loss
             + BOUNDEDNESS_WEIGHT * boundedness_loss)
    return {"total_loss": total, "positive_loss": positive_loss,
            "derivative_loss": derivative_loss, "boundedness_loss": boundedness_loss,
            "origin_loss": origin_loss, "near_origin_loss": near_loss,
            "far_from_origin_loss": far_loss}


def _run_case(key, batch, s_dim, u_dim, h_dim, nonzero_origin):
    k_states, k_u, k_w1, k_b1, k_w2, k_a, k_b, k_o = jax.random.split(key, 8)

    if nonzero_origin:
        origin = 0.05 * jax.random.normal(k_o, (1, s_dim), dtype=jnp.float32)
    else:
        origin = jnp.zeros((1, s_dim), dtype=jnp.float32)

    states = jax.random.normal(k_states, (batch, s_dim), dtype=jnp.float32)
    # put one sample very close to the origin so the "near" branch is exercised
    states = states.at[0].set(origin[0] + 1e-3)
    controls = jax.random.normal(k_u, (batch, u_dim), dtype=jnp.float32)

    params = {
        "w1": 0.5 * jax.random.normal(k_w1, (s_dim, h_dim), dtype=jnp.float32),
        "b1": 0.1 * jax.random.normal(k_b1, (1, h_dim), dtype=jnp.float32),
        "w2": 0.5 * jax.random.normal(k_w2, (h_dim, 1), dtype=jnp.float32),
        "b2": jnp.zeros((1, 1), dtype=jnp.float32),
        "A": -0.5 * jnp.eye(s_dim, dtype=jnp.float32)
             + 0.05 * jax.random.normal(k_a, (s_dim, s_dim), dtype=jnp.float32),
        "B": 0.1 * jax.random.normal(k_b, (s_dim, u_dim), dtype=jnp.float32),
    }

    out = lyapunov_loss(states, controls, origin, params)
    jax.block_until_ready(out)

    ref = _reference(states, controls, origin, params)
    for k in out:
        np.testing.assert_allclose(np.asarray(out[k]), np.asarray(ref[k]),
                                   rtol=1e-4, atol=1e-5)


if __name__ == "__main__":
    S, U, H = 4, 2, 32
    key = jax.random.PRNGKey(0)
    k_small, k_big = jax.random.split(key)

    # Small case (single tile, single shard).
    _run_case(k_small, batch=8, s_dim=S, u_dim=U, h_dim=H, nonzero_origin=False)
    # Larger case exercising padding / lane masking and (on dual-TC parts) the parallel shard axis.
    _run_case(k_big, batch=300, s_dim=S, u_dim=U, h_dim=H, nonzero_origin=True)

    print("KERNEL_OK")
</pallas_src>

<mosaic_0001>
module attributes {stable_mosaic.version = 11 : i64} {
  func.func @_lyapunov_partial_kernel(%arg0: i32, %arg1: i32, %arg2: memref<6x128xf32, #tpu.memory_space<vmem>>, %arg3: memref<4x1xf32, #tpu.memory_space<vmem>>, %arg4: memref<64x6xf32, #tpu.memory_space<vmem>>, %arg5: memref<32x1xf32, #tpu.memory_space<vmem>>, %arg6: memref<32x1xf32, #tpu.memory_space<vmem>>, %arg7: memref<1x1xf32, #tpu.memory_space<vmem>>, %arg8: memref<8x128xf32, #tpu.memory_space<vmem>>) attributes {dimension_semantics = [#tpu.dimension_semantics<parallel>, #tpu.dimension_semantics<arbitrary>], iteration_bounds = array<i64: 1, 1>, scalar_prefetch = 0 : i64, scratch_operands = 0 : i64, tpu.core_type = #tpu.core_type<tc>, window_params = [{transform_indices = @transform_0, window_bounds = array<i64: 6, 128>}, {pipeline_mode = #tpu.pipeline_mode<synchronous>, transform_indices = @transform_1, window_bounds = array<i64: 4, 1>}, {pipeline_mode = #tpu.pipeline_mode<synchronous>, transform_indices = @transform_2, window_bounds = array<i64: 64, 6>}, {pipeline_mode = #tpu.pipeline_mode<synchronous>, transform_indices = @transform_3, window_bounds = array<i64: 32, 1>}, {pipeline_mode = #tpu.pipeline_mode<synchronous>, transform_indices = @transform_4, window_bounds = array<i64: 32, 1>}, {pipeline_mode = #tpu.pipeline_mode<synchronous>, transform_indices = @transform_5, window_bounds = array<i64: 1, 1>}, {transform_indices = @transform_6, window_bounds = array<i64: 8, 128>}]} {
    %c0_i32 = arith.constant 0 : i32
    %0 = arith.cmpi eq, %arg1, %c0_i32 : i32
    %1 = arith.extui %0 : i1 to i32
    %c0_i32_0 = arith.constant 0 : i32
    %2 = arith.cmpi ne, %1, %c0_i32_0 : i32
    scf.if %2 {
      %cst_29 = arith.constant 0.000000e+00 : f32
      %81 = vector.broadcast %cst_29 : f32 to vector<8x128xf32>
      %c0_30 = arith.constant 0 : index
      %c0_31 = arith.constant 0 : index
      %82 = vector.load %arg8[%c0_30, %c0_31] : memref<8x128xf32, #tpu.memory_space<vmem>>, vector<8x128xf32>
      tpu.vector_store %arg8[%c0_30, %c0_31], %81 {strides = array<i32>} : memref<8x128xf32, #tpu.memory_space<vmem>>, vector<8x128xf32>,
    } else {
    }
    %c0 = arith.constant 0 : index
    %c0_1 = arith.constant 0 : index
    %3 = vector.load %arg2[%c0, %c0_1] : memref<6x128xf32, #tpu.memory_space<vmem>>, vector<6x128xf32>
    %4 = vector.extract_strided_slice %3 {offsets = [0, 0], sizes = [4, 128], strides = [1, 1]} : vector<6x128xf32> to vector<4x128xf32>
    %c0_2 = arith.constant 0 : index
    %c0_3 = arith.constant 0 : index
    %5 = vector.load %arg3[%c0_2, %c0_3] : memref<4x1xf32, #tpu.memory_space<vmem>>, vector<4x1xf32>
    %c0_4 = arith.constant 0 : index
    %c0_5 = arith.constant 0 : index
    %6 = vector.load %arg4[%c0_4, %c0_5] : memref<64x6xf32, #tpu.memory_space<vmem>>, vector<64x6xf32>
    %c0_6 = arith.constant 0 : index
    %c0_7 = arith.constant 0 : index
    %7 = vector.load %arg5[%c0_6, %c0_7] : memref<32x1xf32, #tpu.memory_space<vmem>>, vector<32x1xf32>
    %c0_8 = arith.constant 0 : index
    %c0_9 = arith.constant 0 : index
    %8 = vector.load %arg6[%c0_8, %c0_9] : memref<32x1xf32, #tpu.memory_space<vmem>>, vector<32x1xf32>
    %c0_10 = arith.constant 0 : index
    %c0_11 = arith.constant 0 : index
    %9 = vector.load %arg7[%c0_10, %c0_11] : memref<1x1xf32, #tpu.memory_space<vmem>>, vector<1x1xf32>
    %cst = arith.constant dense<0.000000e+00> : vector<64x128xf32>
    %10 = tpu.matmul %6, %3, %cst {dimension_numbers = #tpu.dot_dimension_numbers<[1], [0], [0], [1], [0, 0, 1, 1], [], []>} : vector<64x6xf32>, vector<6x128xf32>, vector<64x128xf32> -> vector<64x128xf32>
    %11 = vector.extract_strided_slice %10 {offsets = [0, 0], sizes = [32, 128], strides = [1, 1]} : vector<64x128xf32> to vector<32x128xf32>
    %12 = vector.broadcast %7 : vector<32x1xf32> to vector<32x128xf32>
    %13 = arith.addf %11, %12 : vector<32x128xf32>
    %14 = math.tanh %13 : vector<32x128xf32>
    %15 = vector.extract_strided_slice %10 {offsets = [32, 0], sizes = [32, 128], strides = [1, 1]} : vector<64x128xf32> to vector<32x128xf32>
    %16 = vector.broadcast %8 : vector<32x1xf32> to vector<32x128xf32>
    %17 = arith.mulf %14, %16 : vector<32x128xf32>
    %cst_12 = arith.constant dense<0.000000e+00> : vector<128xf32>
    %18 = vector.multi_reduction <add>, %17, %cst_12 [0] : vector<32x128xf32> to vector<128xf32>
    %19 = vector.shape_cast %18 : vector<128xf32> to vector<1x128xf32>
    %20 = vector.broadcast %9 : vector<1x1xf32> to vector<1x128xf32>
    %21 = arith.addf %19, %20 : vector<1x128xf32>
    %22 = arith.mulf %14, %14 : vector<32x128xf32>
    %cst_13 = arith.constant 1.000000e+00 : f32
    %23 = vector.broadcast %cst_13 : f32 to vector<32x128xf32>
    %24 = arith.subf %23, %22 : vector<32x128xf32>
    %25 = vector.broadcast %8 : vector<32x1xf32> to vector<32x128xf32>
    %26 = arith.mulf %24, %25 : vector<32x128xf32>
    %27 = arith.mulf %26, %15 : vector<32x128xf32>
    %cst_14 = arith.constant dense<0.000000e+00> : vector<128xf32>
    %28 = vector.multi_reduction <add>, %27, %cst_14 [0] : vector<32x128xf32> to vector<128xf32>
    %29 = vector.shape_cast %28 : vector<128xf32> to vector<1x128xf32>
    %30 = vector.broadcast %5 : vector<4x1xf32> to vector<4x128xf32>
    %31 = arith.subf %4, %30 : vector<4x128xf32>
    %32 = arith.mulf %31, %31 : vector<4x128xf32>
    %cst_15 = arith.constant dense<0.000000e+00> : vector<128xf32>
    %33 = vector.multi_reduction <add>, %32, %cst_15 [0] : vector<4x128xf32> to vector<128xf32>
    %34 = vector.shape_cast %33 : vector<128xf32> to vector<1x128xf32>
    %35 = math.sqrt %34 : vector<1x128xf32>
    %c1_i32 = arith.constant 1 : i32
    %36 = arith.muli %arg0, %c1_i32 : i32
    %37 = arith.addi %36, %arg1 : i32
    %c128_i32 = arith.constant 128 : i32
    %38 = arith.muli %37, %c128_i32 : i32
    %39 = tpu.iota {dimensions = array<i32: 1>} : vector<1x128xi32>
    %40 = vector.broadcast %38 : i32 to vector<1x128xi32>
    %41 = arith.addi %40, %39 : vector<1x128xi32>
    %c8_i32 = arith.constant 8 : i32
    %42 = vector.broadcast %c8_i32 : i32 to vector<1x128xi32>
    %43 = arith.cmpi slt, %41, %42 : vector<1x128xi32>
    %44 = arith.extui %43 : vector<1x128xi1> to vector<1x128xi32>
    %45 = arith.sitofp %44 : vector<1x128xi32> to vector<1x128xf32>
    %cst_16 = arith.constant 0.00999999977 : f32
    %46 = vector.broadcast %cst_16 : f32 to vector<1x128xf32>
    %47 = arith.cmpf olt, %35, %46 : vector<1x128xf32>
    %48 = arith.extui %47 : vector<1x128xi1> to vector<1x128xi32>
    %49 = arith.sitofp %48 : vector<1x128xi32> to vector<1x128xf32>
    %50 = arith.mulf %49, %45 : vector<1x128xf32>
    %51 = arith.subf %45, %50 : vector<1x128xf32>
    %cst_17 = arith.constant 9.99999974E-5 : f32
    %52 = vector.broadcast %cst_17 : f32 to vector<1x128xf32>
    %53 = arith.cmpf ogt, %35, %52 : vector<1x128xf32>
    %54 = arith.extui %53 : vector<1x128xi1> to vector<1x128xi32>
    %55 = arith.sitofp %54 : vector<1x128xi32> to vector<1x128xf32>
    %56 = arith.mulf %55, %45 : vector<1x128xf32>
    %cst_18 = arith.constant 1.000000e-01 : f32
    %57 = vector.broadcast %cst_18 : f32 to vector<1x128xf32>
    %58 = arith.subf %57, %21 : vector<1x128xf32>
    %cst_19 = arith.constant 0.000000e+00 : f32
    %59 = vector.broadcast %cst_19 : f32 to vector<1x128xf32>
    %60 = arith.maximumf %58, %59 : vector<1x128xf32>
    %61 = arith.mulf %60, %50 : vector<1x128xf32>
    %cst_20 = arith.constant 1.000000e-01 : f32
    %62 = vector.broadcast %cst_20 : f32 to vector<1x128xf32>
    %63 = arith.mulf %62, %35 : vector<1x128xf32>
    %64 = arith.subf %63, %21 : vector<1x128xf32>
    %cst_21 = arith.constant 0.000000e+00 : f32
    %65 = vector.broadcast %cst_21 : f32 to vector<1x128xf32>
    %66 = arith.maximumf %64, %65 : vector<1x128xf32>
    %67 = arith.mulf %66, %51 : vector<1x128xf32>
    %cst_22 = arith.constant 1.000000e-01 : f32
    %68 = vector.broadcast %cst_22 : f32 to vector<1x128xf32>
    %69 = arith.mulf %68, %35 : vector<1x128xf32>
    %70 = arith.addf %29, %69 : vector<1x128xf32>
    %cst_23 = arith.constant 0.000000e+00 : f32
    %71 = vector.broadcast %cst_23 : f32 to vector<1x128xf32>
    %72 = arith.maximumf %70, %71 : vector<1x128xf32>
    %73 = arith.mulf %72, %56 : vector<1x128xf32>
    %74 = arith.mulf %21, %21 : vector<1x128xf32>
    %75 = arith.mulf %74, %45 : vector<1x128xf32>
    %cst_24 = arith.constant 0.000000e+00 : f32
    %76 = vector.broadcast %cst_24 : f32 to vector<1x128xf32>
    %77 = tpu.concatenate %61, %50, %67, %51, %73, %56, %75, %76 in 0 : vector<1x128xf32>, vector<1x128xf32>, vector<1x128xf32>, vector<1x128xf32>, vector<1x128xf32>, vector<1x128xf32>, vector<1x128xf32>, vector<1x128xf32> -> vector<8x128xf32>
    %c0_25 = arith.constant 0 : index
    %c0_26 = arith.constant 0 : index
    %78 = vector.load %arg8[%c0_25, %c0_26] : memref<8x128xf32, #tpu.memory_space<vmem>>, vector<8x128xf32>
    %79 = arith.addf %78, %77 : vector<8x128xf32>
    %c0_27 = arith.constant 0 : index
    %c0_28 = arith.constant 0 : index
    %80 = vector.load %arg8[%c0_27, %c0_28] : memref<8x128xf32, #tpu.memory_space<vmem>>, vector<8x128xf32>
    tpu.vector_store %arg8[%c0_27, %c0_28], %79 {strides = array<i32>} : memref<8x128xf32, #tpu.memory_space<vmem>>, vector<8x128xf32>,
    return
  }
  func.func @transform_0(%arg0: i32, %arg1: i32) -> (i32, i32) {
    %c1_i32 = arith.constant 1 : i32
    %0 = arith.muli %arg0, %c1_i32 : i32
    %1 = arith.addi %0, %arg1 : i32
    %c0_i32 = arith.constant 0 : i32
    %c0_i32_0 = arith.constant 0 : i32
    return %c0_i32, %1 : i32, i32
  }
  func.func @transform_1(%arg0: i32, %arg1: i32) -> (i32, i32) {
    %c0_i32 = arith.constant 0 : i32
    %c0_i32_0 = arith.constant 0 : i32
    %c0_i32_1 = arith.constant 0 : i32
    return %c0_i32, %c0_i32_0 : i32, i32
  }
  func.func @transform_2(%arg0: i32, %arg1: i32) -> (i32, i32) {
    %c0_i32 = arith.constant 0 : i32
    %c0_i32_0 = arith.constant 0 : i32
    %c0_i32_1 = arith.constant 0 : i32
    return %c0_i32, %c0_i32_0 : i32, i32
  }
  func.func @transform_3(%arg0: i32, %arg1: i32) -> (i32, i32) {
    %c0_i32 = arith.constant 0 : i32
    %c0_i32_0 = arith.constant 0 : i32
    %c0_i32_1 = arith.constant 0 : i32
    return %c0_i32, %c0_i32_0 : i32, i32
  }
  func.func @transform_4(%arg0: i32, %arg1: i32) -> (i32, i32) {
    %c0_i32 = arith.constant 0 : i32
    %c0_i32_0 = arith.constant 0 : i32
    %c0_i32_1 = arith.constant 0 : i32
    return %c0_i32, %c0_i32_0 : i32, i32
  }
  func.func @transform_5(%arg0: i32, %arg1: i32) -> (i32, i32) {
    %c0_i32 = arith.constant 0 : i32
    %c0_i32_0 = arith.constant 0 : i32
    %c0_i32_1 = arith.constant 0 : i32
    return %c0_i32, %c0_i32_0 : i32, i32
  }
  func.func @transform_6(%arg0: i32, %arg1: i32) -> (i32, i32) {
    %c0_i32 = arith.constant 0 : i32
    %c0_i32_0 = arith.constant 0 : i32
    return %arg0, %c0_i32 : i32, i32
  }
}

</mosaic_0001>

<llo_original>
// kernel: tpu_custom_call.1
$region0: #{tpu_custom_call.1}
  #allocation0 [shape = 'u32[]', space=smem, size = 0x4, offset = 0x4, fixed_abs, tag = 'smem constant byte address 0x4 - core index']
  #allocation1 [shape = 'u32[144,128]{1,0:T(1,128)}', space=vmem, size = 0x12000, scoped, tag = 'internal scratch']
  #allocation2 [shape = 'f32[1,1]{1,0:T(1,128)S(1)}', space=vmem, size = 0x200, scoped, tag = 'scoped memory for tpu_custom_call.1']
  %s0 = inlined_call_operand.vmem [shape: f32[6,128], index: 0, kind: input, shape index: {}]
  %s1 = inlined_call_operand.vmem [shape: f32[4,1], index: 1, kind: input, shape index: {}]
  %s2 = inlined_call_operand.vmem [shape: f32[64,6], index: 2, kind: input, shape index: {}]
  %s3 = inlined_call_operand.vmem [shape: f32[32,1], index: 3, kind: input, shape index: {}]
  %s4 = inlined_call_operand.vmem [shape: f32[32,1], index: 4, kind: input, shape index: {}]
  %s5 = inlined_call_operand.<no memory space> [shape: f32[1,1], index: 5, kind: input, shape index: {}]
  %s6 = inlined_call_operand.hbm [shape: f32[8,128], index: 6, kind: output, shape index: {}]
  %s7 = sld [smem:[#allocation0]]
  $region38: #{tpu_custom_call.1} parent=0
    _
  %s9 = ssub.s32 1, %s7
  %s10 = scalar_select 0, %s9, %s7
  %v11 = vstv %s5
  %12 = vst [vmem:[#allocation2] sm:$0x1] %v11
  $region1: #{tpu_custom_call.1} parent=0
    #allocation3 [shape = 'u8[4096]{0}', space=vmem, size = 0x1000, scoped, tag = 'output window, operand 0, single buffered']
    #allocation4 [shape = 's32[1]{0}', space=sflag, size = 0x4, scoped, tag = 'scoped memory for tpu_custom_call.1']
    %13 = vsyncpa [#allocation4], 0
    // Predicated region
    $region2: #{tpu_custom_call.1} parent=1 // pred_check
      _
    $region3: #{tpu_custom_call.1} parent=1 // pred_check_branch
      %15 = sbr.rel (0) target = $region5
    $region4: #{tpu_custom_call.1} parent=1 // pred_region
      %s16 = sadd.s32 0, 0
      %p17 = scmp.lt.s32.totalorder %s16, 0
      %s18 = scalar_select %p17, %s16, 0
      %s19 = smul.addr %s18, 8
      %s20 = scalar_lea.vmem %s0, %s19
      %s21 = sadd.s32 0, 0
    $region5: #{tpu_custom_call.1} parent=1 // pred_fallthru
      _
    // Predicated region
    $region6: #{tpu_custom_call.1} parent=1 // pred_check
      _
    $region7: #{tpu_custom_call.1} parent=1 // pred_check_branch
      %23 = sbr.rel (0) target = $region9
    $region8: #{tpu_custom_call.1} parent=1 // pred_region
      _
    $region9: #{tpu_custom_call.1} parent=1 // pred_fallthru
      _
    // Predicated region
    $region10: #{tpu_custom_call.1} parent=1 // pred_check
      _
    $region11: #{tpu_custom_call.1} parent=1 // pred_check_branch
      %25 = sbr.rel (0) target = $region13
    $region12: #{tpu_custom_call.1} parent=1 // pred_region
      _
    $region13: #{tpu_custom_call.1} parent=1 // pred_fallthru
      _
    // Predicated region
    $region14: #{tpu_custom_call.1} parent=1 // pred_check
      _
    $region15: #{tpu_custom_call.1} parent=1 // pred_check_branch
      %27 = sbr.rel (0) target = $region17
    $region16: #{tpu_custom_call.1} parent=1 // pred_region
      _
    $region17: #{tpu_custom_call.1} parent=1 // pred_fallthru
      _
    // Predicated region
    $region18: #{tpu_custom_call.1} parent=1 // pred_check
      _
    $region19: #{tpu_custom_call.1} parent=1 // pred_check_branch
      %29 = sbr.rel (0) target = $region21
    $region20: #{tpu_custom_call.1} parent=1 // pred_region
      _
    $region21: #{tpu_custom_call.1} parent=1 // pred_fallthru
      _
    // Predicated region
    $region22: #{tpu_custom_call.1} parent=1 // pred_check
      _
    $region23: #{tpu_custom_call.1} parent=1 // pred_check_branch
      %31 = sbr.rel (0) target = $region25
    $region24: #{tpu_custom_call.1} parent=1 // pred_region
      _
    $region25: #{tpu_custom_call.1} parent=1 // pred_fallthru
      _
    %s32 = sadd.s32 0, 0
    %p33 = scmp.lt.s32.totalorder %s32, 0
    %s34 = scalar_select %p33, %s32, 0
    %s35 = smul.addr %s34, 8
    %s36 = scalar_lea.vmem %s0, %s35
    %s37 = sadd.s32 0, 0
    %p38 = scmp.lt.s32.totalorder %s37, 0
    %s39 = scalar_select %p38, %s37, 0
    %s40 = smul.addr %s39, 8
    %s41 = scalar_lea.vmem %s0, %s40
    %s42 = sadd.s32 0, 0
    %p43 = scmp.eq.s32.totalorder 0, 0
    // Predicated region
    $region26: #{tpu_custom_call.1} parent=1 // pred_check
      %p44 = pneg %p43
    $region27: #{tpu_custom_call.1} parent=1 // pred_check_branch
      %46 = sbr.rel (%p44) target = $region29
    $region28: #{tpu_custom_call.1} parent=1 // pred_region
      %47 = vst [vmem:[#allocation3] sm:$0xff] 0.0
    $region29: #{tpu_custom_call.1} parent=1 // pred_fallthru
      _
    %v48 = vld [vmem:[%s41] sm:$0x3f]
    %v49 = vld [vmem:[%s1] sm:$0xf]
    %v50 = vld [vmem:[%s2] sm:$0xff]
    %v51 = vld [vmem:[%s2 + $0x8] sm:$0xff]
    %v52 = vld [vmem:[%s2 + $0x10] sm:$0xff]
    %v53 = vld [vmem:[%s2 + $0x18] sm:$0xff]
    %v54 = vld [vmem:[%s2 + $0x20] sm:$0xff]
    %v55 = vld [vmem:[%s2 + $0x28] sm:$0xff]
    %v56 = vld [vmem:[%s2 + $0x30] sm:$0xff]
    %v57 = vld [vmem:[%s2 + $0x38] sm:$0xff]
    %v58 = vld [vmem:[%s3] sm:$0xff]
    %v59 = vld [vmem:[%s3 + $0x8] sm:$0xff]
    %v60 = vld [vmem:[%s3 + $0x10] sm:$0xff]
    %v61 = vld [vmem:[%s3 + $0x18] sm:$0xff]
    %v62 = vld [vmem:[%s4] sm:$0xff]
    %v63 = vld [vmem:[%s4 + $0x8] sm:$0xff]
    %v64 = vld [vmem:[%s4 + $0x10] sm:$0xff]
    %v65 = vld [vmem:[%s4 + $0x18] sm:$0xff]
    %v66 = vld [vmem:[#allocation2] sm:$0x1]
    %vm67 = vcmask 48128
    %v69 = vsel %vm67, %v50, 0
    %v72 = vsel %vm67, %v51, 0
    %v75 = vsel %vm67, %v52, 0
    %v78 = vsel %vm67, %v53, 0
    %v81 = vsel %vm67, %v54, 0
    %v84 = vsel %vm67, %v55, 0
    %v87 = vsel %vm67, %v56, 0
    %v90 = vsel %vm67, %v57, 0
    %vm92 = vcmask 1045504
    %v94 = vsel %vm92, %v48, 0
    %96 = vmatprep.subr.mxu0 0.0
    %97 = vmatpush1.msra.mxu0 0.0
    %98 = vmatprep.subr.mxu0 0.0
    %99 = vmatpush1.msra.mxu0 0.0
    %100 = vmatprep.subr.mxu0 0.0
    %101 = vmatpush1.msra.mxu0 0.0
    %102 = vmatprep.subr.mxu0 0.0
    %103 = vmatpush1.msra.mxu0 0.0
    %104 = vmatprep.subr.mxu0 0.0
    %105 = vmatpush1.msra.mxu0 0.0
    %106 = vmatprep.subr.mxu0 0.0
    %107 = vmatpush1.msra.mxu0 0.0
    %108 = vmatprep.subr.mxu0 0.0
    %109 = vmatpush1.msra.mxu0 0.0
    %110 = vmatprep.subr.mxu0 0.0
    %111 = vmatpush1.msra.mxu0 0.0
    %112 = vmatprep.subr.mxu0 0.0
    %113 = vmatpush1.msra.mxu0 0.0
    %114 = vmatprep.subr.mxu0 0.0
    %115 = vmatpush1.msra.mxu0 0.0
    %116 = vmatprep.subr.mxu0 0.0
    %117 = vmatpush1.msra.mxu0 0.0
    %118 = vmatprep.subr.mxu0 0.0
    %119 = vmatpush1.msra.mxu0 0.0
    %120 = vmatprep.subr.mxu0 0.0
    %121 = vmatpush1.msra.mxu0 0.0
    %122 = vmatprep.subr.mxu0 0.0
    %123 = vmatpush1.msra.mxu0 0.0
    %124 = vmatprep.subr.mxu0 0.0
    %125 = vmatpush1.msra.mxu0 0.0
    %126 = vmatprep.subr.mxu0 0.0
    %127 = vmatpush1.msra.mxu0 %v94
    %128 = vmatprep.subr.mxu0 0.0
    %129 = vmatpush2.msra.mxu0 0.0
    %130 = vmatprep.subr.mxu0 0.0
    %131 = vmatpush2.msra.mxu0 0.0
    %132 = vmatprep.subr.mxu0 0.0
    %133 = vmatpush2.msra.mxu0 0.0
    %134 = vmatprep.subr.mxu0 0.0
    %135 = vmatpush2.msra.mxu0 0.0
    %136 = vmatprep.subr.mxu0 0.0
    %137 = vmatpush2.msra.mxu0 0.0
    %138 = vmatprep.subr.mxu0 0.0
    %139 = vmatpush2.msra.mxu0 0.0
    %140 = vmatprep.subr.mxu0 0.0
    %141 = vmatpush2.msra.mxu0 0.0
    %142 = vmatprep.subr.mxu0 0.0
    %143 = vmatpush2.msra.mxu0 0.0
    %144 = vmatprep.subr.mxu0 0.0
    %145 = vmatpush2.msra.mxu0 0.0
    %146 = vmatprep.subr.mxu0 0.0
    %147 = vmatpush2.msra.mxu0 0.0
    %148 = vmatprep.subr.mxu0 0.0
    %149 = vmatpush2.msra.mxu0 0.0
    %150 = vmatprep.subr.mxu0 0.0
    %151 = vmatpush2.msra.mxu0 0.0
    %152 = vmatprep.subr.mxu0 0.0
    %153 = vmatpush2.msra.mxu0 0.0
    %154 = vmatprep.subr.mxu0 0.0
    %155 = vmatpush2.msra.mxu0 0.0
    %156 = vmatprep.subr.mxu0 0.0
    %157 = vmatpush2.msra.mxu0 0.0
    %158 = vmatprep.subr.mxu0 0.0
    %159 = vmatpush2.msra.mxu0 0.0
    %160 = vmatprep.mubr.f32.mxu0 0.0
    %161 = vmatmul.mubr.f32.gmra.mxu0 %v69
    %v162 = vpop.f32.mrf.mxu0
    %v163 = vadd.f32 0.0, %v162
    %v164 = vpop.f32.mrf.mxu0
    %165 = vmatprep.mubr.f32.mxu0 0.0
    %166 = vmatmul.mubr.f32.gmra.mxu0 %v72
    %v167 = vpop.f32.mrf.mxu0
    %v168 = vadd.f32 0.0, %v167
    %v169 = vpop.f32.mrf.mxu0
    %170 = vmatprep.mubr.f32.mxu0 0.0
    %171 = vmatmul.mubr.f32.gmra.mxu0 %v75
    %v172 = vpop.f32.mrf.mxu0
    %v173 = vadd.f32 0.0, %v172
    %v174 = vpop.f32.mrf.mxu0
    %175 = vmatprep.mubr.f32.mxu0 0.0
    %176 = vmatmul.mubr.f32.gmra.mxu0 %v78
    %v177 = vpop.f32.mrf.mxu0
    %v178 = vadd.f32 0.0, %v177
    %v179 = vpop.f32.mrf.mxu0
    %180 = vmatprep.mubr.f32.mxu0 0.0
    %181 = vmatmul.mubr.f32.gmra.mxu0 %v81
    %v182 = vpop.f32.mrf.mxu0
    %v183 = vadd.f32 0.0, %v182
    %v184 = vpop.f32.mrf.mxu0
    %185 = vmatprep.mubr.f32.mxu0 0.0
    %186 = vmatmul.mubr.f32.gmra.mxu0 %v84
    %v187 = vpop.f32.mrf.mxu0
    %v188 = vadd.f32 0.0, %v187
    %v189 = vpop.f32.mrf.mxu0
    %190 = vmatprep.mubr.f32.mxu0 0.0
    %191 = vmatmul.mubr.f32.gmra.mxu0 %v87
    %v192 = vpop.f32.mrf.mxu0
    %v193 = vadd.f32 0.0, %v192
    %v194 = vpop.f32.mrf.mxu0
    %195 = vmatprep.mubr.f32.mxu0 0.0
    %196 = vmatmul.mubr.f32.gmra.mxu0 %v90
    %v197 = vpop.f32.mrf.mxu0
    %v198 = vadd.f32 0.0, %v197
    %v199 = vpop.f32.mrf.mxu0
    %200 = vdwg.mxu0
    %202 = vset.pattern.permute.xlu0 0
    %203 = vperm.xlu0 %202, %v58
    %v204 = vpop.permute.xlu0 %203
    %207 = vset.pattern.permute.xlu0 0
    %208 = vperm.xlu0 %207, %v59
    %v209 = vpop.permute.xlu0 %208
    %212 = vset.pattern.permute.xlu0 0
    %213 = vperm.xlu0 %212, %v60
    %v214 = vpop.permute.xlu0 %213
    %217 = vset.pattern.permute.xlu0 0
    %218 = vperm.xlu0 %217, %v61
    %v219 = vpop.permute.xlu0 %218
    %v221 = vadd.f32 %v163, %v204
    %v222 = vadd.f32 %v168, %v209
    %v223 = vadd.f32 %v173, %v214
    %v224 = vadd.f32 %v178, %v219
    %v225 = vtanh.pop %v221
    %v226 = vtanh.pop %v222
    %v227 = vtanh.pop %v223
    %v228 = vtanh.pop %v224
    %230 = vset.pattern.permute.xlu0 0
    %231 = vperm.xlu0 %230, %v62
    %v232 = vpop.permute.xlu0 %231
    %235 = vset.pattern.permute.xlu0 0
    %236 = vperm.xlu0 %235, %v63
    %v237 = vpop.permute.xlu0 %236
    %240 = vset.pattern.permute.xlu0 0
    %241 = vperm.xlu0 %240, %v64
    %v242 = vpop.permute.xlu0 %241
    %245 = vset.pattern.permute.xlu0 0
    %246 = vperm.xlu0 %245, %v65
    %v247 = vpop.permute.xlu0 %246
    %v249 = vmul.f32 %v225, %v232
    %v250 = vmul.f32 %v226, %v237
    %v251 = vmul.f32 %v227, %v242
    %v252 = vmul.f32 %v228, %v247
    %v253 = vadd.f32 %v249, %v250
    %v254 = vadd.f32 %v253, %v251
    %v255 = vadd.f32 %v254, %v252
    %v256 = vrot.slane %v255, 4
    %v257 = vadd.f32 %v255, %v256
    %v258 = vrot.slane %v257, 2
    %v259 = vadd.f32 %v257, %v258
    %v260 = vrot.slane %v259, 1
    %v261 = vadd.f32 %v259, %v260
    %263 = vset.pattern.permute.xlu0 0
    %264 = vperm.xlu0 %263, %v66
    %v265 = vpop.permute.xlu0 %264
    %v267 = vlaneseq
    %v268 = vshrl.u32 %v267, 7
    %v269 = vsub.s32 0, %v268
    %v270 = vrot.slane %v265, %v269
    %v271 = vadd.f32 %v261, %v270
    %v272 = vmul.f32 %v225, %v225
    %v273 = vmul.f32 %v226, %v226
    %v274 = vmul.f32 %v227, %v227
    %v275 = vmul.f32 %v228, %v228
    %v276 = vsub.f32 1.0, %v272
    %v277 = vsub.f32 1.0, %v273
    %v278 = vsub.f32 1.0, %v274
    %v279 = vsub.f32 1.0, %v275
    %v280 = vmul.f32 %v276, %v232
    %v281 = vmul.f32 %v277, %v237
    %v282 = vmul.f32 %v278, %v242
    %v283 = vmul.f32 %v279, %v247
    %v284 = vmul.f32 %v280, %v183
    %v285 = vmul.f32 %v281, %v188
    %v286 = vmul.f32 %v282, %v193
    %v287 = vmul.f32 %v283, %v198
    %v288 = vadd.f32 %v284, %v285
    %v289 = vadd.f32 %v288, %v286
    %v290 = vadd.f32 %v289, %v287
    %v291 = vrot.slane %v290, 4
    %v292 = vadd.f32 %v290, %v291
    %v293 = vrot.slane %v292, 2
    %v294 = vadd.f32 %v292, %v293
    %v295 = vrot.slane %v294, 1
    %v296 = vadd.f32 %v294, %v295
    %298 = vset.pattern.permute.xlu0 0
    %299 = vperm.xlu0 %298, %v49
    %v300 = vpop.permute.xlu0 %299
    %v302 = vsub.f32 %v48, %v300
    %v303 = vmul.f32 %v302, %v302
    %vm304 = vcmask 1043456
    %v305 = vsel %vm304, %v303, 0.0
    %v306 = vrot.slane %v305, 4
    %v307 = vadd.f32 %v305, %v306
    %v308 = vrot.slane %v307, 2
    %v309 = vadd.f32 %v307, %v308
    %v310 = vrot.slane %v309, 1
    %v311 = vadd.f32 %v309, %v310
    %v312 = vrsqrt.pop %v311
    %v313 = vmul.f32 %v311, %v312
    %vm314 = vcmp.eq.f32.partialorder %v311, inf
    %v315 = vsel %vm314, %v311, %v313
    %vm316 = vcmp.eq.f32.partialorder %v311, 0.0
    %v317 = vand.u32 %v311, 2147483648
    %v318 = vsel %vm316, %v317, %v315
    %s319 = sadd.s32 0, 0
    %s320 = smul.u32 %s319, 128
    %v321 = vlaneseq
    %v322 = vand.u32 %v321, 127
    %v323 = vstv %s320
    %v324 = vadd.s32 %v323, %v322
    %vm325 = vcmp.lt.s32.totalorder %v324, 8
    %v326 = vsel %vm325, 1, 0
    %v327 = vcvt.s32.f32 %v326
    %vm328 = vcmp.lt.f32.partialorder %v318, 0.01
    %v329 = vsel %vm328, 1, 0
    %v330 = vcvt.s32.f32 %v329
    %v331 = vmul.f32 %v330, %v327
    %v332 = vsub.f32 %v327, %v331
    %vm333 = vcmp.gt.f32.partialorder %v318, 0.0001
    %v334 = vsel %vm333, 1, 0
    %v335 = vcvt.s32.f32 %v334
    %v336 = vmul.f32 %v335, %v327
    %v337 = vsub.f32 0.1, %v271
    %v338 = vmax.f32 %v337, 0.0
    %v339 = vmul.f32 %v338, %v331
    %v340 = vmul.f32 %v318, 0.1
    %v341 = vsub.f32 %v340, %v271
    %v342 = vmax.f32 %v341, 0.0
    %v343 = vmul.f32 %v342, %v332
    %v344 = vadd.f32 %v296, %v340
    %v345 = vmax.f32 %v344, 0.0
    %v346 = vmul.f32 %v345, %v336
    %v347 = vmul.f32 %v271, %v271
    %v348 = vmul.f32 %v347, %v327
    %vm349 = vcmask 1040384
    %v350 = vsel %vm349, %v339, %v331
    %vm351 = vcmask 1041408
    %v352 = vsel %vm351, %v350, %v343
    %vm353 = vcmask 1042432
    %v354 = vsel %vm353, %v352, %v332
    %v355 = vsel %vm304, %v354, %v346
    %vm356 = vcmask 1044480
    %v357 = vsel %vm356, %v355, %v336
    %v358 = vsel %vm92, %v357, %v348
    %vm359 = vcmask 1046528
    %v360 = vsel %vm359, %v358, 0.0
    %v361 = vld [vmem:[#allocation3] sm:$0xff]
    %v362 = vadd.f32 %v361, %v360
    %363 = vst [vmem:[#allocation3] sm:$0xff] %v362
    // Predicated region
    $region30: #{tpu_custom_call.1} parent=1 // pred_check
      _
    $region31: #{tpu_custom_call.1} parent=1 // pred_check_branch
      %365 = sbr.rel (0) target = $region33
    $region32: #{tpu_custom_call.1} parent=1 // pred_region
      %s367 = ssub.s32 128, 128
      %368 = vsyncadd [#allocation4], %s367
      %s370 = sshll.u32 [#allocation3], 4
      %s371 = int_to_ptr.vmem [resolvable:$true] %s370
      %373 = dma.vmem_to_hbm [thread:$0]  %s371, 128, %s6, [#allocation4]
    $region33: #{tpu_custom_call.1} parent=1 // pred_fallthru
      _
    // Predicated region
    $region34: #{tpu_custom_call.1} parent=1 // pred_check
      _
    $region35: #{tpu_custom_call.1} parent=1 // pred_check_branch
      %375 = sbr.rel (0) target = $region37
    $region36: #{tpu_custom_call.1} parent=1 // pred_region
      %376 = dma.done [#allocation4], 128
    $region37: #{tpu_custom_call.1} parent=1 // pred_fallthru
      _
    %377 = vsyncpa [#allocation4], 1

</llo_original>
